<compile_context>
chip_gen: v7x
topology: tpu7x:2x2x1
jax: 0.10.0
libtpu: 0.0.40
codegen_flags: <defaults>
</compile_context>

<pallas_src>
import functools

import numpy as np
import jax
import jax.numpy as jnp
from jax.experimental import pallas as pl
from jax.experimental.pallas import tpu as pltpu


# ----------------------------------------------------------------------------
# Plain-JAX glue: mesh preprocessing (mirror of compute_normal in the module)
# ----------------------------------------------------------------------------
def compute_normal_jnp(v, f):
    i0, i1, i2 = f[:, 0], f[:, 1], f[:, 2]
    v0, v1, v2 = v[i0], v[i1], v[i2]
    fn = jnp.cross(v1 - v0, v2 - v0)
    fn = fn / jnp.sqrt(jnp.clip(jnp.sum(fn * fn, -1, keepdims=True), 1e-20))
    vn = jnp.zeros_like(v)
    vn = vn.at[i0].add(fn).at[i1].add(fn).at[i2].add(fn)
    vn = jnp.where(jnp.sum(vn * vn, -1, keepdims=True) > 1e-20,
                   vn, jnp.array([0.0, 0.0, 1.0], jnp.float32))
    vn = vn / jnp.sqrt(jnp.clip(jnp.sum(vn * vn, -1, keepdims=True), 1e-20))
    return vn, fn


# ----------------------------------------------------------------------------
# Kernel 1: homogeneous vertex transform  v_clip = mvp @ [v, 1]   (lane-dense)
# ----------------------------------------------------------------------------
def _vertex_transform_kernel(mvp_ref, vt_ref, out_ref):
    # mvp_ref: SMEM flat [B*16] f32
    # vt_ref : VMEM [4, Vp]  rows = (x, y, z, 1), Vp multiple of 128 (full-lane rows)
    # out_ref: VMEM [1, 4, Vp]
    b = pl.program_id(0)
    x = vt_ref[0:1, :]
    y = vt_ref[1:2, :]
    z = vt_ref[2:3, :]
    w = vt_ref[3:4, :]
    base = b * 16
    for j in range(4):
        col = (x * mvp_ref[base + 4 * j + 0] +
               y * mvp_ref[base + 4 * j + 1] +
               z * mvp_ref[base + 4 * j + 2] +
               w * mvp_ref[base + 4 * j + 3])                    # (1, Vp) full-lane
        out_ref[0, j:j + 1, :] = col


def vertex_transform(v, mvp):
    V = v.shape[0]
    B = mvp.shape[0]
    Vp = int(np.ceil(V / 128) * 128)
    vt = jnp.concatenate([jnp.transpose(v.astype(jnp.float32)),
                          jnp.ones((1, V), jnp.float32)], axis=0)      # (4, V)
    vt = jnp.pad(vt, ((0, 0), (0, Vp - V)))
    out = pl.pallas_call(
        _vertex_transform_kernel,
        out_shape=jax.ShapeDtypeStruct((B, 4, Vp), jnp.float32),
        grid=(B,),
        in_specs=[
            pl.BlockSpec(memory_space=pltpu.MemorySpace.SMEM),   # mvp (flat)
            pl.BlockSpec((4, Vp), lambda b: (0, 0)),             # [4, Vp] vertices
        ],
        out_specs=pl.BlockSpec((1, 4, Vp), lambda b: (b, 0, 0)),
        compiler_params=pltpu.CompilerParams(dimension_semantics=("parallel",)),
    )(mvp.reshape(-1).astype(jnp.float32), vt)
    return jnp.transpose(out, (0, 2, 1))[:, :V, :]                 # (B, V, 4)


# ----------------------------------------------------------------------------
# Kernel 2: rasterizer (z-buffer over face chunks) + perspective-correct
#           interpolation + normal shading.  All per-face setup is precomputed.
#
# Per-face coefficient row (lane index in the [B, Fp, 24] table):
#   0..8   : a0,b0,c0, a1,b1,c1, a2,b2,c2   with  q_k(px,py) = a_k*px + b_k*py + c_k
#            (q_k = area-normalized edge function * 1/w_k; q_k >= 0 <=> inside)
#   9..11  : az,bz,cz  with  z_ndc(px,py) = az*px + bz*py + cz
#   12..20 : n0x,n0y,n0z, n1x,n1y,n1z, n2x,n2y,n2z   (vertex normals)
#   21..23 : padding
# Invalid / padded faces have c0 = -1 and zero elsewhere => never inside.
# ----------------------------------------------------------------------------
def _raster_kernel(coef_ref,
                   color_ref, depth_ref, rast_ref,
                   bz_s, hit_s, q0_s, q1_s, qs_s, ux_s, uy_s, uz_s,
                   *, H, W, TH, TW, F_TILE, unroll):
    hi = pl.program_id(1)
    wi = pl.program_id(2)
    fi = pl.program_id(3)
    nf = pl.num_programs(3)

    # ---- init z-buffer state at the first face chunk ----
    @pl.when(fi == 0)
    def _init():
        bz_s[...] = jnp.full((TH, TW), 1e30, jnp.float32)   # best NDC depth
        hit_s[...] = jnp.zeros((TH, TW), jnp.float32)       # tri_id + 1 (0 = background)
        q0_s[...] = jnp.zeros((TH, TW), jnp.float32)        # winner's q0
        q1_s[...] = jnp.zeros((TH, TW), jnp.float32)        # winner's q1
        qs_s[...] = jnp.zeros((TH, TW), jnp.float32)        # winner's q0+q1+q2
        ux_s[...] = jnp.zeros((TH, TW), jnp.float32)        # winner's unnormalized normal
        uy_s[...] = jnp.zeros((TH, TW), jnp.float32)
        uz_s[...] = jnp.zeros((TH, TW), jnp.float32)

    # ---- pixel NDC coordinates for this (TH, TW) tile ----
    rows = jax.lax.broadcasted_iota(jnp.int32, (TH, TW), 0).astype(jnp.float32)
    cols = jax.lax.broadcasted_iota(jnp.int32, (TH, TW), 1).astype(jnp.float32)
    py = ((hi * TH).astype(jnp.float32) + rows + 0.5) * (2.0 / H) - 1.0
    px = ((wi * TW).astype(jnp.float32) + cols + 0.5) * (2.0 / W) - 1.0

    face_base = (fi * F_TILE).astype(jnp.float32)

    carry0 = (bz_s[...], hit_s[...], q0_s[...], q1_s[...], qs_s[...],
              ux_s[...], uy_s[...], uz_s[...])

    def body(j, carry):
        best_z, hit, q0w, q1w, qsw, ux, uy, uz = carry
        row = coef_ref[0, pl.ds(j, 1), :]                    # (1, 24)

        def c(k):
            return row[:, k:k + 1]                           # (1, 1) -> broadcasts

        # edge / depth evaluation: pure FMAs (coefficients precomputed outside)
        q0 = px * c(0) + py * c(1) + c(2)
        q1 = px * c(3) + py * c(4) + c(5)
        q2 = px * c(6) + py * c(7) + c(8)
        z = px * c(9) + py * c(10) + c(11)
        qs = q0 + q1 + q2

        inside = (q0 >= 0.0) & (q1 >= 0.0) & (q2 >= 0.0)
        win = inside & (z >= -1.0) & (z <= 1.0) & (z < best_z)

        # unnormalized perspective-correct normal (normalized once after the loop)
        unx = q0 * c(12) + q1 * c(15) + q2 * c(18)
        uny = q0 * c(13) + q1 * c(16) + q2 * c(19)
        unz = q0 * c(14) + q1 * c(17) + q2 * c(20)

        tri = face_base + j.astype(jnp.float32) + 1.0
        sel = lambda new, old: jnp.where(win, new, old)
        return (sel(z, best_z), sel(tri, hit), sel(q0, q0w), sel(q1, q1w),
                sel(qs, qsw), sel(unx, ux), sel(uny, uy), sel(unz, uz))

    best_z, hit, q0w, q1w, qsw, ux, uy, uz = jax.lax.fori_loop(
        0, F_TILE, body, carry0, unroll=unroll)

    bz_s[...] = best_z
    hit_s[...] = hit
    q0_s[...] = q0w
    q1_s[...] = q1w
    qs_s[...] = qsw
    ux_s[...] = ux
    uy_s[...] = uy
    uz_s[...] = uz

    # ---- finalize: single approx reciprocal, shading, outputs ----
    @pl.when(fi == nf - 1)
    def _finalize():
        mask = hit > 0.0
        maskf = mask.astype(jnp.float32)
        qs_safe = jnp.where(jnp.abs(qsw) > 1e-20, qsw, 1.0)
        iqs = pl.reciprocal(qs_safe, approx=True)            # EUP, not VALU
        u = q0w * iqs                                        # perspective-correct bary 0
        v = q1w * iqs                                        # perspective-correct bary 1
        nx, ny, nz = ux * iqs, uy * iqs, uz * iqs

        # shading == 'normal':  color = (normal + 1) / 2 ; antialias -> clamp only
        # TODO(synk): dr.antialias (analytic silhouette AA) has no Pallas equivalent.
        cr = jnp.clip((nx + 1.0) * 0.5, 0.0, 1.0)
        cg = jnp.clip((ny + 1.0) * 0.5, 0.0, 1.0)
        cb = jnp.clip((nz + 1.0) * 0.5, 0.0, 1.0)

        color_ref[0, 0, :, :] = cr
        color_ref[0, 1, :, :] = cg
        color_ref[0, 2, :, :] = cb
        depth_ref[0, 0, :, :] = jnp.where(mask, iqs, 0.0)    # interpolated clip-space w
        rast_ref[0, 0, :, :] = u
        rast_ref[0, 1, :, :] = v
        rast_ref[0, 2, :, :] = jnp.where(mask, best_z, 0.0)  # NDC depth
        rast_ref[0, 3, :, :] = hit                           # tri_id + 1 (f32)
        # TODO(synk): tri ids carried in f32 lose exactness for F >= 2^24 faces.


# ----------------------------------------------------------------------------
# Wrapper equivalent of MeshRenderer.forward
# ----------------------------------------------------------------------------
def mesh_renderer_forward(mesh, data, light_d=None, ambient_ratio=1.0,
                          shading='normal', spp=1, is_train=False):
    # TODO(synk): shading='albedo'/'lambertian' require dr.texture (mipmapped UV sampling);
    #             only shading='normal' is implemented.
    assert shading == 'normal'
    # TODO(synk): spp > 1 supersampling + scale_img_nhwc resize not implemented.
    assert spp == 1

    v, f, vn = mesh['v'], mesh['f'], mesh['vn']
    mvp = data['mvp'].astype(jnp.float32)
    h, w = int(data['image_height']), int(data['image_width'])
    z_near, z_far = float(data['z_near']), float(data['z_far'])
    B = mvp.shape[0]
    F = int(f.shape[0])

    # 1) vertex transform (Pallas kernel, lane-dense)
    v_clip = vertex_transform(v.astype(jnp.float32), mvp)            # (B, V, 4)

    # 2) per-pixel normal source (is_train recomputes from clip-space xyz, like the module)
    if is_train:
        vn_use, _ = compute_normal_jnp(v_clip[0, :, :3], f)
    else:
        vn_use = vn
    vn_use = vn_use.astype(jnp.float32)

    # 3) per-face coefficient precompute (plain-JAX glue, hoisted out of the hot loop)
    fidx = f.reshape(-1)
    vc = v_clip[:, fidx, :].reshape(B, F, 3, 4)
    X, Y, Z, Wc = vc[..., 0], vc[..., 1], vc[..., 2], vc[..., 3]      # (B, F, 3)
    iw = 1.0 / jnp.where(jnp.abs(Wc) > 1e-12, Wc, 1.0)
    sx, sy = X * iw, Y * iw
    sx0, sx1, sx2 = sx[..., 0], sx[..., 1], sx[..., 2]
    sy0, sy1, sy2 = sy[..., 0], sy[..., 1], sy[..., 2]
    area = (sx1 - sx0) * (sy2 - sy0) - (sx2 - sx0) * (sy1 - sy0)
    ok = (jnp.abs(area) > 1e-12) & jnp.all(Wc > 1e-8, axis=-1)
    inv_area = 1.0 / jnp.where(jnp.abs(area) > 1e-12, area, 1.0)
    # area-normalized edge functions  e_k(p) = A_k*px + B_k*py + C_k
    A0 = (sy1 - sy2) * inv_area; B0 = (sx2 - sx1) * inv_area; C0 = (sx1 * sy2 - sx2 * sy1) * inv_area
    A1 = (sy2 - sy0) * inv_area; B1 = (sx0 - sx2) * inv_area; C1 = (sx2 * sy0 - sx0 * sy2) * inv_area
    A2 = (sy0 - sy1) * inv_area; B2 = (sx1 - sx0) * inv_area; C2 = (sx0 * sy1 - sx1 * sy0) * inv_area
    iw0, iw1, iw2 = iw[..., 0], iw[..., 1], iw[..., 2]
    a0, b0, c0 = A0 * iw0, B0 * iw0, C0 * iw0                         # q_k = e_k / w_k
    a1, b1, c1 = A1 * iw1, B1 * iw1, C1 * iw1
    a2, b2, c2 = A2 * iw2, B2 * iw2, C2 * iw2
    Zc0, Zc1, Zc2 = Z[..., 0], Z[..., 1], Z[..., 2]
    az = a0 * Zc0 + a1 * Zc1 + a2 * Zc2                               # z_ndc affine coeffs
    bz = b0 * Zc0 + b1 * Zc1 + b2 * Zc2
    cz = c0 * Zc0 + c1 * Zc1 + c2 * Zc2

    m = lambda x: jnp.where(ok, x, 0.0)                               # invalid faces: never hit
    coef = jnp.stack([m(a0), m(b0), jnp.where(ok, c0, -1.0),
                      m(a1), m(b1), m(c1),
                      m(a2), m(b2), m(c2),
                      m(az), m(bz), m(cz)], axis=-1)                  # (B, F, 12)
    fn_b = jnp.broadcast_to(vn_use[fidx].reshape(1, F, 9), (B, F, 9))
    coef = jnp.concatenate([coef, fn_b, jnp.zeros((B, F, 3), jnp.float32)],
                           axis=-1).astype(jnp.float32)               # (B, F, 24)

    # faces streamed in chunks along the last ("arbitrary") grid axis
    F_TILE = min(256, int(np.ceil(F / 8) * 8))
    Fp = int(np.ceil(F / F_TILE) * F_TILE)
    if Fp > F:
        pad = jnp.zeros((B, Fp - F, 24), jnp.float32).at[:, :, 2].set(-1.0)
        coef = jnp.concatenate([coef, pad], axis=1)
    n_fchunks = Fp // F_TILE

    # 4) tile selection (lane-dense W padded to 128; ~2K pixels/tile to stay in vregs)
    Wp = int(np.ceil(w / 128) * 128)
    TW = 256 if (Wp >= 256 and Wp % 256 == 0) else 128
    TH = max(8, min(int(np.ceil(h / 8) * 8), (2048 // TW) // 8 * 8))
    Hp = int(np.ceil(h / TH) * TH)

    kern = functools.partial(_raster_kernel, H=h, W=w, TH=TH, TW=TW,
                             F_TILE=F_TILE, unroll=2)

    def om(c):
        return pl.BlockSpec((1, c, TH, TW), lambda b, hi, wi, fi: (b, 0, hi, wi))

    out_shapes = (
        jax.ShapeDtypeStruct((B, 3, Hp, Wp), jnp.float32),   # color (planar)
        jax.ShapeDtypeStruct((B, 1, Hp, Wp), jnp.float32),   # depth (interpolated clip w)
        jax.ShapeDtypeStruct((B, 4, Hp, Wp), jnp.float32),   # rast (u, v, z_ndc, tri_id+1)
    )
    color_p, depth_p, rast_p = pl.pallas_call(
        kern,
        out_shape=out_shapes,
        grid=(B, Hp // TH, Wp // TW, n_fchunks),
        in_specs=[pl.BlockSpec((1, F_TILE, 24), lambda b, hi, wi, fi: (b, fi, 0))],
        out_specs=(om(3), om(1), om(4)),
        scratch_shapes=[pltpu.VMEM((TH, TW), jnp.float32) for _ in range(8)],
        compiler_params=pltpu.CompilerParams(
            dimension_semantics=("parallel", "parallel", "parallel", "arbitrary"),
            vmem_limit_bytes=32 * 1024 * 1024),
    )(coef)

    # 5) wrapper-side derivation of the remaining outputs (deduplicated kernel outputs)
    crop_nhwc = lambda x: jnp.transpose(x[:, :, :h, :w], (0, 2, 3, 1))
    color = crop_nhwc(color_p)
    depth = crop_nhwc(depth_p)
    rast = crop_nhwc(rast_p)
    normal = color                                   # identical to color for shading='normal'
    mask = rast[..., 3:4] > 0.0
    maskf = mask.astype(jnp.float32)
    alpha = maskf                                    # dr.interpolate(ones) (no AA) + clamp
    depth_from_ndc = (2.0 * z_far * z_near /
                      (rast[..., 2:3] * (z_near - z_far) + z_near + z_far)) * maskf
    # TODO(synk): rast_db (screen-space barycentric derivatives from nvdiffrast) not implemented.
    rast_db = jnp.zeros((B, h, w, 4), jnp.float32)

    return {'image': color, 'normal': normal, 'alpha': alpha, 'mask': mask,
            'depth': depth, 'depth_from_ndc': depth_from_ndc,
            'rast': rast, 'rast_db': rast_db}


# ----------------------------------------------------------------------------
# Demo
# ----------------------------------------------------------------------------
if __name__ == "__main__":
    key = jax.random.PRNGKey(0)

    # Small cube mesh (V=8, F=12) with deterministic jitter.
    verts = np.array([[x, y, z]
                      for x in (-0.5, 0.5) for y in (-0.5, 0.5) for z in (-0.5, 0.5)],
                     dtype=np.float32)
    faces = np.array([
        [0, 1, 3], [0, 3, 2],
        [4, 6, 7], [4, 7, 5],
        [0, 4, 5], [0, 5, 1],
        [2, 3, 7], [2, 7, 6],
        [0, 2, 6], [0, 6, 4],
        [1, 5, 7], [1, 7, 3],
    ], dtype=np.int32)
    v = jnp.asarray(verts) + 0.02 * jax.random.normal(key, verts.shape, jnp.float32)
    f = jnp.asarray(faces)
    vn, _ = compute_normal_jnp(v, f)

    B, H, W = 2, 16, 16
    z_near, z_far = 0.1, 10.0

    # Simple perspective * view (camera at z = 2.5 looking at origin), second view rotated.
    fov = np.deg2rad(49.1)
    fl = 1.0 / np.tan(fov / 2)
    proj = np.array([[fl, 0, 0, 0],
                     [0, fl, 0, 0],
                     [0, 0, (z_far + z_near) / (z_near - z_far),
                      2 * z_far * z_near / (z_near - z_far)],
                     [0, 0, -1, 0]], dtype=np.float32)
    mvps = []
    for bi in range(B):
        ang = np.deg2rad(20.0 * bi + 10.0)
        rot = np.array([[np.cos(ang), 0, np.sin(ang), 0],
                        [0, 1, 0, 0],
                        [-np.sin(ang), 0, np.cos(ang), 0],
                        [0, 0, 0, 1]], dtype=np.float32)
        view = np.eye(4, dtype=np.float32)
        view[2, 3] = -2.5
        mvps.append(proj @ view @ rot)
    mvp = jnp.asarray(np.stack(mvps))

    mesh = {'v': v, 'f': f, 'vn': vn}
    data = {'mvp': mvp, 'image_height': H, 'image_width': W,
            'z_near': z_near, 'z_far': z_far}

    out = mesh_renderer_forward(mesh, data, shading='normal', spp=1, is_train=False)
    out = jax.block_until_ready(out)

    assert out['image'].shape == (B, H, W, 3)
    assert out['normal'].shape == (B, H, W, 3)
    assert out['alpha'].shape == (B, H, W, 1)
    assert out['mask'].shape == (B, H, W, 1) and out['mask'].dtype == jnp.bool_
    assert out['depth'].shape == (B, H, W, 1)
    assert out['depth_from_ndc'].shape == (B, H, W, 1)
    assert out['rast'].shape == (B, H, W, 4)
    assert bool(jnp.all(jnp.isfinite(out['image'])))
    print("KERNEL_OK")
</pallas_src>

<mosaic_0001>
module attributes {stable_mosaic.version = 11 : i64} {
  func.func @_vertex_transform_kernel(%arg0: i32, %arg1: memref<32xf32, #tpu.memory_space<smem>>, %arg2: memref<4x128xf32, #tpu.memory_space<vmem>>, %arg3: memref<1x4x128xf32, #tpu.memory_space<vmem>>) attributes {dimension_semantics = [#tpu.dimension_semantics<parallel>], iteration_bounds = array<i64: 2>, scalar_prefetch = 0 : i64, scratch_operands = 0 : i64, tpu.core_type = #tpu.core_type<tc>, window_params = [{transform_indices = @transform_0, window_bounds = array<i64: 32>}, {pipeline_mode = #tpu.pipeline_mode<synchronous>, transform_indices = @transform_1, window_bounds = array<i64: 4, 128>}, {transform_indices = @transform_2, window_bounds = array<i64: 1, 4, 128>}]} {
    %c0 = arith.constant 0 : index
    %c0_0 = arith.constant 0 : index
    %0 = vector.load %arg2[%c0, %c0_0] : memref<4x128xf32, #tpu.memory_space<vmem>>, vector<1x128xf32>
    %c1 = arith.constant 1 : index
    %c0_1 = arith.constant 0 : index
    %1 = vector.load %arg2[%c1, %c0_1] : memref<4x128xf32, #tpu.memory_space<vmem>>, vector<1x128xf32>
    %c2 = arith.constant 2 : index
    %c0_2 = arith.constant 0 : index
    %2 = vector.load %arg2[%c2, %c0_2] : memref<4x128xf32, #tpu.memory_space<vmem>>, vector<1x128xf32>
    %c3 = arith.constant 3 : index
    %c0_3 = arith.constant 0 : index
    %3 = vector.load %arg2[%c3, %c0_3] : memref<4x128xf32, #tpu.memory_space<vmem>>, vector<1x128xf32>
    %c16_i32 = arith.constant 16 : i32
    %4 = arith.muli %arg0, %c16_i32 : i32
    %c0_i32 = arith.constant 0 : i32
    %5 = arith.addi %4, %c0_i32 : i32
    %c0_i32_4 = arith.constant 0 : i32
    %6 = arith.addi %5, %c0_i32_4 : i32
    %7 = arith.index_cast %6 : i32 to index
    %8 = memref.load %arg1[%7] : memref<32xf32, #tpu.memory_space<smem>>
    %9 = vector.broadcast %8 : f32 to vector<1x128xf32>
    %10 = arith.mulf %0, %9 : vector<1x128xf32>
    %c0_i32_5 = arith.constant 0 : i32
    %11 = arith.addi %4, %c0_i32_5 : i32
    %c1_i32 = arith.constant 1 : i32
    %12 = arith.addi %11, %c1_i32 : i32
    %13 = arith.index_cast %12 : i32 to index
    %14 = memref.load %arg1[%13] : memref<32xf32, #tpu.memory_space<smem>>
    %15 = vector.broadcast %14 : f32 to vector<1x128xf32>
    %16 = arith.mulf %1, %15 : vector<1x128xf32>
    %17 = arith.addf %10, %16 : vector<1x128xf32>
    %c0_i32_6 = arith.constant 0 : i32
    %18 = arith.addi %4, %c0_i32_6 : i32
    %c2_i32 = arith.constant 2 : i32
    %19 = arith.addi %18, %c2_i32 : i32
    %20 = arith.index_cast %19 : i32 to index
    %21 = memref.load %arg1[%20] : memref<32xf32, #tpu.memory_space<smem>>
    %22 = vector.broadcast %21 : f32 to vector<1x128xf32>
    %23 = arith.mulf %2, %22 : vector<1x128xf32>
    %24 = arith.addf %17, %23 : vector<1x128xf32>
    %c0_i32_7 = arith.constant 0 : i32
    %25 = arith.addi %4, %c0_i32_7 : i32
    %c3_i32 = arith.constant 3 : i32
    %26 = arith.addi %25, %c3_i32 : i32
    %27 = arith.index_cast %26 : i32 to index
    %28 = memref.load %arg1[%27] : memref<32xf32, #tpu.memory_space<smem>>
    %29 = vector.broadcast %28 : f32 to vector<1x128xf32>
    %30 = arith.mulf %3, %29 : vector<1x128xf32>
    %31 = arith.addf %24, %30 : vector<1x128xf32>
    %c0_8 = arith.constant 0 : index
    %c0_9 = arith.constant 0 : index
    %c0_10 = arith.constant 0 : index
    %32 = vector.load %arg3[%c0_8, %c0_9, %c0_10] : memref<1x4x128xf32, #tpu.memory_space<vmem>>, vector<1x1x128xf32>
    %33 = vector.shape_cast %32 : vector<1x1x128xf32> to vector<1x128xf32>
    %34 = vector.shape_cast %31 : vector<1x128xf32> to vector<1x1x128xf32>
    tpu.vector_store %arg3[%c0_8, %c0_9, %c0_10], %34 {strides = array<i32>} : memref<1x4x128xf32, #tpu.memory_space<vmem>>, vector<1x1x128xf32>,
    %c4_i32 = arith.constant 4 : i32
    %35 = arith.addi %4, %c4_i32 : i32
    %c0_i32_11 = arith.constant 0 : i32
    %36 = arith.addi %35, %c0_i32_11 : i32
    %37 = arith.index_cast %36 : i32 to index
    %38 = memref.load %arg1[%37] : memref<32xf32, #tpu.memory_space<smem>>
    %39 = vector.broadcast %38 : f32 to vector<1x128xf32>
    %40 = arith.mulf %0, %39 : vector<1x128xf32>
    %c4_i32_12 = arith.constant 4 : i32
    %41 = arith.addi %4, %c4_i32_12 : i32
    %c1_i32_13 = arith.constant 1 : i32
    %42 = arith.addi %41, %c1_i32_13 : i32
    %43 = arith.index_cast %42 : i32 to index
    %44 = memref.load %arg1[%43] : memref<32xf32, #tpu.memory_space<smem>>
    %45 = vector.broadcast %44 : f32 to vector<1x128xf32>
    %46 = arith.mulf %1, %45 : vector<1x128xf32>
    %47 = arith.addf %40, %46 : vector<1x128xf32>
    %c4_i32_14 = arith.constant 4 : i32
    %48 = arith.addi %4, %c4_i32_14 : i32
    %c2_i32_15 = arith.constant 2 : i32
    %49 = arith.addi %48, %c2_i32_15 : i32
    %50 = arith.index_cast %49 : i32 to index
    %51 = memref.load %arg1[%50] : memref<32xf32, #tpu.memory_space<smem>>
    %52 = vector.broadcast %51 : f32 to vector<1x128xf32>
    %53 = arith.mulf %2, %52 : vector<1x128xf32>
    %54 = arith.addf %47, %53 : vector<1x128xf32>
    %c4_i32_16 = arith.constant 4 : i32
    %55 = arith.addi %4, %c4_i32_16 : i32
    %c3_i32_17 = arith.constant 3 : i32
    %56 = arith.addi %55, %c3_i32_17 : i32
    %57 = arith.index_cast %56 : i32 to index
    %58 = memref.load %arg1[%57] : memref<32xf32, #tpu.memory_space<smem>>
    %59 = vector.broadcast %58 : f32 to vector<1x128xf32>
    %60 = arith.mulf %3, %59 : vector<1x128xf32>
    %61 = arith.addf %54, %60 : vector<1x128xf32>
    %c0_18 = arith.constant 0 : index
    %c1_19 = arith.constant 1 : index
    %c0_20 = arith.constant 0 : index
    %62 = vector.load %arg3[%c0_18, %c1_19, %c0_20] : memref<1x4x128xf32, #tpu.memory_space<vmem>>, vector<1x1x128xf32>
    %63 = vector.shape_cast %62 : vector<1x1x128xf32> to vector<1x128xf32>
    %64 = vector.shape_cast %61 : vector<1x128xf32> to vector<1x1x128xf32>
    tpu.vector_store %arg3[%c0_18, %c1_19, %c0_20], %64 {strides = array<i32>} : memref<1x4x128xf32, #tpu.memory_space<vmem>>, vector<1x1x128xf32>,
    %c8_i32 = arith.constant 8 : i32
    %65 = arith.addi %4, %c8_i32 : i32
    %c0_i32_21 = arith.constant 0 : i32
    %66 = arith.addi %65, %c0_i32_21 : i32
    %67 = arith.index_cast %66 : i32 to index
    %68 = memref.load %arg1[%67] : memref<32xf32, #tpu.memory_space<smem>>
    %69 = vector.broadcast %68 : f32 to vector<1x128xf32>
    %70 = arith.mulf %0, %69 : vector<1x128xf32>
    %c8_i32_22 = arith.constant 8 : i32
    %71 = arith.addi %4, %c8_i32_22 : i32
    %c1_i32_23 = arith.constant 1 : i32
    %72 = arith.addi %71, %c1_i32_23 : i32
    %73 = arith.index_cast %72 : i32 to index
    %74 = memref.load %arg1[%73] : memref<32xf32, #tpu.memory_space<smem>>
    %75 = vector.broadcast %74 : f32 to vector<1x128xf32>
    %76 = arith.mulf %1, %75 : vector<1x128xf32>
    %77 = arith.addf %70, %76 : vector<1x128xf32>
    %c8_i32_24 = arith.constant 8 : i32
    %78 = arith.addi %4, %c8_i32_24 : i32
    %c2_i32_25 = arith.constant 2 : i32
    %79 = arith.addi %78, %c2_i32_25 : i32
    %80 = arith.index_cast %79 : i32 to index
    %81 = memref.load %arg1[%80] : memref<32xf32, #tpu.memory_space<smem>>
    %82 = vector.broadcast %81 : f32 to vector<1x128xf32>
    %83 = arith.mulf %2, %82 : vector<1x128xf32>
    %84 = arith.addf %77, %83 : vector<1x128xf32>
    %c8_i32_26 = arith.constant 8 : i32
    %85 = arith.addi %4, %c8_i32_26 : i32
    %c3_i32_27 = arith.constant 3 : i32
    %86 = arith.addi %85, %c3_i32_27 : i32
    %87 = arith.index_cast %86 : i32 to index
    %88 = memref.load %arg1[%87] : memref<32xf32, #tpu.memory_space<smem>>
    %89 = vector.broadcast %88 : f32 to vector<1x128xf32>
    %90 = arith.mulf %3, %89 : vector<1x128xf32>
    %91 = arith.addf %84, %90 : vector<1x128xf32>
    %c0_28 = arith.constant 0 : index
    %c2_29 = arith.constant 2 : index
    %c0_30 = arith.constant 0 : index
    %92 = vector.load %arg3[%c0_28, %c2_29, %c0_30] : memref<1x4x128xf32, #tpu.memory_space<vmem>>, vector<1x1x128xf32>
    %93 = vector.shape_cast %92 : vector<1x1x128xf32> to vector<1x128xf32>
    %94 = vector.shape_cast %91 : vector<1x128xf32> to vector<1x1x128xf32>
    tpu.vector_store %arg3[%c0_28, %c2_29, %c0_30], %94 {strides = array<i32>} : memref<1x4x128xf32, #tpu.memory_space<vmem>>, vector<1x1x128xf32>,
    %c12_i32 = arith.constant 12 : i32
    %95 = arith.addi %4, %c12_i32 : i32
    %c0_i32_31 = arith.constant 0 : i32
    %96 = arith.addi %95, %c0_i32_31 : i32
    %97 = arith.index_cast %96 : i32 to index
    %98 = memref.load %arg1[%97] : memref<32xf32, #tpu.memory_space<smem>>
    %99 = vector.broadcast %98 : f32 to vector<1x128xf32>
    %100 = arith.mulf %0, %99 : vector<1x128xf32>
    %c12_i32_32 = arith.constant 12 : i32
    %101 = arith.addi %4, %c12_i32_32 : i32
    %c1_i32_33 = arith.constant 1 : i32
    %102 = arith.addi %101, %c1_i32_33 : i32
    %103 = arith.index_cast %102 : i32 to index
    %104 = memref.load %arg1[%103] : memref<32xf32, #tpu.memory_space<smem>>
    %105 = vector.broadcast %104 : f32 to vector<1x128xf32>
    %106 = arith.mulf %1, %105 : vector<1x128xf32>
    %107 = arith.addf %100, %106 : vector<1x128xf32>
    %c12_i32_34 = arith.constant 12 : i32
    %108 = arith.addi %4, %c12_i32_34 : i32
    %c2_i32_35 = arith.constant 2 : i32
    %109 = arith.addi %108, %c2_i32_35 : i32
    %110 = arith.index_cast %109 : i32 to index
    %111 = memref.load %arg1[%110] : memref<32xf32, #tpu.memory_space<smem>>
    %112 = vector.broadcast %111 : f32 to vector<1x128xf32>
    %113 = arith.mulf %2, %112 : vector<1x128xf32>
    %114 = arith.addf %107, %113 : vector<1x128xf32>
    %c12_i32_36 = arith.constant 12 : i32
    %115 = arith.addi %4, %c12_i32_36 : i32
    %c3_i32_37 = arith.constant 3 : i32
    %116 = arith.addi %115, %c3_i32_37 : i32
    %117 = arith.index_cast %116 : i32 to index
    %118 = memref.load %arg1[%117] : memref<32xf32, #tpu.memory_space<smem>>
    %119 = vector.broadcast %118 : f32 to vector<1x128xf32>
    %120 = arith.mulf %3, %119 : vector<1x128xf32>
    %121 = arith.addf %114, %120 : vector<1x128xf32>
    %c0_38 = arith.constant 0 : index
    %c3_39 = arith.constant 3 : index
    %c0_40 = arith.constant 0 : index
    %122 = vector.load %arg3[%c0_38, %c3_39, %c0_40] : memref<1x4x128xf32, #tpu.memory_space<vmem>>, vector<1x1x128xf32>
    %123 = vector.shape_cast %122 : vector<1x1x128xf32> to vector<1x128xf32>
    %124 = vector.shape_cast %121 : vector<1x128xf32> to vector<1x1x128xf32>
    tpu.vector_store %arg3[%c0_38, %c3_39, %c0_40], %124 {strides = array<i32>} : memref<1x4x128xf32, #tpu.memory_space<vmem>>, vector<1x1x128xf32>,
    return
  }
  func.func @transform_0(%arg0: i32) -> i32 {
    %c0_i32 = arith.constant 0 : i32
    %c0_i32_0 = arith.constant 0 : i32
    return %c0_i32 : i32
  }
  func.func @transform_1(%arg0: i32) -> (i32, i32) {
    %c0_i32 = arith.constant 0 : i32
    %c0_i32_0 = arith.constant 0 : i32
    %c0_i32_1 = arith.constant 0 : i32
    return %c0_i32, %c0_i32_0 : i32, i32
  }
  func.func @transform_2(%arg0: i32) -> (i32, i32, i32) {
    %c0_i32 = arith.constant 0 : i32
    %c0_i32_0 = arith.constant 0 : i32
    %c0_i32_1 = arith.constant 0 : i32
    return %arg0, %c0_i32, %c0_i32_0 : i32, i32, i32
  }
}

</mosaic_0001>

<llo_original>
// kernel: tpu_custom_call.1
$region0: #{tpu_custom_call.1}
  #allocation0 [shape = 'u32[]', space=smem, size = 0x4, offset = 0x4, fixed_abs, tag = 'smem constant byte address 0x4 - core index']
  #allocation1 [shape = 'u32[144,128]{1,0:T(1,128)}', space=vmem, size = 0x12000, scoped, tag = 'internal scratch']
  %s0 = inlined_call_operand.hbm [shape: f32[32], index: 0, kind: input, shape index: {}]
  %s1 = inlined_call_operand.hbm [shape: f32[4,128], index: 1, kind: input, shape index: {}]
  %s2 = inlined_call_operand.hbm [shape: f32[2,4,128], index: 2, kind: output, shape index: {}]
  %s3 = sld [smem:[#allocation0]]
  $region49: #{tpu_custom_call.1} parent=0
    _
  %s5 = ssub.s32 1, %s3
  %s6 = scalar_select 0, %s5, %s3
  $region1: #{tpu_custom_call.1} parent=0
    #allocation2 [shape = 'u8[512]{0}', space=smem, size = 0x200, scoped, tag = 'input window, operand 0, single buffered']
    #allocation3 [shape = 's32[2]{0}', space=sflag, size = 0x8, scoped, tag = 'scoped memory for tpu_custom_call.1']
    #allocation4 [shape = 's32[2]{0}', space=sflag, size = 0x8, scoped, tag = 'scoped memory for tpu_custom_call.1']
    #allocation5 [shape = 's32[2]{0}', space=sflag, size = 0x8, scoped, tag = 'scoped memory for tpu_custom_call.1']
    #allocation6 [shape = 'u8[2048]{0}', space=vmem, size = 0x800, scoped, tag = 'input window, operand 1, single buffered']
    #allocation7 [shape = 'u8[4096]{0}', space=vmem, size = 0x1000, scoped, tag = 'output window, operand 0']
    %7 = vsyncpa [#allocation5], 0
    %8 = vsyncpa [#allocation3], 0
    %9 = vsyncpa [#allocation4], 0
    %s10 = scalar_lea.sflag [#allocation4], 1
    %11 = vsyncpa %s10, 0
    loop: start=0, step=1, limit=4
    $region2: #{tpu_custom_call.1} parent=1 // loop_pre_header
      _
    $region3: #{tpu_custom_call.1} parent=1 // loop_header
      %s13 = sphi 0, %s17
      %p14 = scmp.ge.s32.totalorder %s13, 4
      %s21 = sphi 0, %s21
      %s23 = sphi 0, %s21
      %s24 = sphi 0, %s23
      %s38 = sphi 0, %s24
      %s42 = sphi 0, %s42
      %s44 = sphi 0, %s42
      %s45 = sphi 0, %s44
      %s59 = sphi 0, %s45
      %s65 = sphi 0, %s67
      %s68 = sphi 0, %s65
      %s69 = sphi 0, %s68
      %s85 = sphi 0, %s69
    $region4: #{tpu_custom_call.1} parent=1 // loop_header_branch
      %16 = sbr.rel (%p14) target = $region8
    $region5: #{tpu_custom_call.1} parent=1 // loop_body
      %s18 = ssub.s32 %s13, 1
      %s19 = ssub.s32 %s13, 2
      %s20 = sadd.s32 %s13, 1
      %s22 = sadd.s32 %s21, 1
      %p25 = scmp.eq.s32.totalorder %s13, 1
      %p26 = scmp.ne.s32.totalorder %s21, %s23
      %p27 = scmp.eq.s32.totalorder %s13, 0
      %p28 = por %p26, %p27
      %p29 = scmp.ne.s32.totalorder %s21, %s23
      %p30 = scmp.eq.s32.totalorder %s18, 1
      %p31 = por %p29, %p30
      %p32 = scmp.ne.s32.totalorder %s23, %s24
      %p33 = scmp.eq.s32.totalorder %s18, 0
      %p34 = por %p32, %p33
      %p35 = scmp.ne.s32.totalorder %s23, %s24
      %p36 = scmp.eq.s32.totalorder %s19, 1
      %p37 = por %p35, %p36
      %p39 = scmp.ne.s32.totalorder %s24, %s38
      %p40 = scmp.eq.s32.totalorder %s19, 0
      %p41 = por %p39, %p40
      %s43 = sadd.s32 %s42, 1
      %p46 = scmp.eq.s32.totalorder %s13, 1
      %p47 = scmp.ne.s32.totalorder %s42, %s44
      %p48 = scmp.eq.s32.totalorder %s13, 0
      %p49 = por %p47, %p48
      %p50 = scmp.ne.s32.totalorder %s42, %s44
      %p51 = scmp.eq.s32.totalorder %s18, 1
      %p52 = por %p50, %p51
      %p53 = scmp.ne.s32.totalorder %s44, %s45
      %p54 = scmp.eq.s32.totalorder %s18, 0
      %p55 = por %p53, %p54
      %p56 = scmp.ne.s32.totalorder %s44, %s45
      %p57 = scmp.eq.s32.totalorder %s19, 1
      %p58 = por %p56, %p57
      %p60 = scmp.ne.s32.totalorder %s45, %s59
      %p61 = scmp.eq.s32.totalorder %s19, 0
      %p62 = por %p60, %p61
      %s63 = ssub.s32 %s13, %s20
      %p64 = scmp.eq.s32.totalorder %s63, 0
      %s66 = sadd.s32 %s65, 1
      %s67 = scalar_select %p64, %s65, %s66
      %p70 = pneg %p64
      %p71 = scmp.eq.s32.totalorder %s13, 1
      %p72 = por %p70, %p71
      %p73 = scmp.ne.s32.totalorder %s65, %s68
      %p74 = scmp.eq.s32.totalorder %s13, 0
      %p75 = por %p73, %p74
      %p76 = scmp.ne.s32.totalorder %s65, %s68
      %p77 = scmp.eq.s32.totalorder %s18, 1
      %p78 = por %p76, %p77
      %p79 = scmp.ne.s32.totalorder %s68, %s69
      %p80 = scmp.eq.s32.totalorder %s18, 0
      %p81 = por %p79, %p80
      %p82 = scmp.ne.s32.totalorder %s68, %s69
      %p83 = scmp.eq.s32.totalorder %s19, 1
      %p84 = por %p82, %p83
      %p86 = scmp.ne.s32.totalorder %s69, %s85
      %p87 = scmp.eq.s32.totalorder %s19, 0
      %p88 = por %p86, %p87
      %p89 = scmp.le.s32.totalorder 1, %s13
      %p90 = scmp.lt.s32.totalorder %s13, 3
      %p91 = pnand %p89, %p90
      %p92 = pneg %p91
      // Predicated region
      $region9: #{tpu_custom_call.1} parent=5 // pred_check
        _
      $region10: #{tpu_custom_call.1} parent=5 // pred_check_branch
        %94 = sbr.rel (%p91) target = $region12
      $region11: #{tpu_custom_call.1} parent=5 // pred_region
        %s95 = ssub.s32 %s13, 1
        // Predicated region
        $region13: #{tpu_custom_call.1} parent=11 // pred_check
          %p96 = pneg %p34
        $region14: #{tpu_custom_call.1} parent=11 // pred_check_branch
          %98 = sbr.rel (%p96) target = $region16
        $region15: #{tpu_custom_call.1} parent=11 // pred_region
          %s100 = ssub.s32 16, 16
          %101 = vsyncadd [#allocation5], %s100
          %104 = dma.hbm_to_smem %s0, 16, [#allocation2], [#allocation5]
        $region16: #{tpu_custom_call.1} parent=11 // pred_fallthru
          _
        // Predicated region
        $region17: #{tpu_custom_call.1} parent=11 // pred_check
          %p105 = pneg %p55
        $region18: #{tpu_custom_call.1} parent=11 // pred_check_branch
          %107 = sbr.rel (%p105) target = $region20
        $region19: #{tpu_custom_call.1} parent=11 // pred_region
          %s109 = ssub.s32 64, 64
          %110 = vsyncadd [#allocation3], %s109
          %s112 = sshll.u32 [#allocation6], 4
          %s113 = int_to_ptr.vmem [resolvable:$true] %s112
          %115 = dma.hbm_to_vmem [thread:$0]  %s1, 64, %s113, [#allocation3]
        $region20: #{tpu_custom_call.1} parent=11 // pred_fallthru
          _
      $region12: #{tpu_custom_call.1} parent=5 // pred_fallthru
        _
      %p116 = scmp.lt.s32.totalorder %s13, 2
      // Predicated region
      $region21: #{tpu_custom_call.1} parent=5 // pred_check
        %p117 = pneg %p116
      $region22: #{tpu_custom_call.1} parent=5 // pred_check_branch
        %119 = sbr.rel (%p117) target = $region24
      $region23: #{tpu_custom_call.1} parent=5 // pred_region
        _
      $region24: #{tpu_custom_call.1} parent=5 // pred_fallthru
        _
      %p120 = scmp.le.s32.totalorder 1, %s13
      %p121 = scmp.lt.s32.totalorder %s13, 3
      %p122 = pnand %p120, %p121
      %p123 = pneg %p122
      // Predicated region
      $region25: #{tpu_custom_call.1} parent=5 // pred_check
        _
      $region26: #{tpu_custom_call.1} parent=5 // pred_check_branch
        %125 = sbr.rel (%p122) target = $region28
      $region27: #{tpu_custom_call.1} parent=5 // pred_region
        %s126 = ssub.s32 %s13, 1
        // Predicated region
        $region29: #{tpu_custom_call.1} parent=27 // pred_check
          %p127 = pneg %p34
        $region30: #{tpu_custom_call.1} parent=27 // pred_check_branch
          %129 = sbr.rel (%p127) target = $region32
        $region31: #{tpu_custom_call.1} parent=27 // pred_region
          %130 = dma.done [#allocation5], 16
        $region32: #{tpu_custom_call.1} parent=27 // pred_fallthru
          _
        // Predicated region
        $region33: #{tpu_custom_call.1} parent=27 // pred_check
          %p131 = pneg %p55
        $region34: #{tpu_custom_call.1} parent=27 // pred_check_branch
          %133 = sbr.rel (%p131) target = $region36
        $region35: #{tpu_custom_call.1} parent=27 // pred_region
          %134 = dma.done [#allocation3], 64
        $region36: #{tpu_custom_call.1} parent=27 // pred_fallthru
          _
        %135 = sfence
        %p136 = pneg %p34
        %p137 = pneg %p31
        %p138 = pneg %p55
        %p139 = pneg %p52
        %p140 = pneg %p81
        %p141 = pneg %p78
        %s142 = sand.u32 %s68, 1
        %s143 = scalar_lea.sflag [#allocation4], %s142
        %s144 = sand.u32 %s68, 1
        %s145 = smul.addr %s144, 4
        %s146 = scalar_lea.vmem [#allocation7], %s145
        %v147 = vld [vmem:[#allocation6] sm:$0x1]
        %v148 = vld [vmem:[#allocation6 + $0x1] sm:$0x1]
        %v149 = vld [vmem:[#allocation6 + $0x2] sm:$0x1]
        %v150 = vld [vmem:[#allocation6 + $0x3] sm:$0x1]
        %s151 = smul.u32 %s18, 16
        %s152 = sld [smem:[#allocation2 + %s151]]
        %v153 = vstv %s152
        %v154 = vmul.f32 %v147, %v153
        %s155 = sadd.s32 %s151, 1
        %s156 = sld [smem:[#allocation2 + %s155]]
        %v157 = vstv %s156
        %v158 = vmul.f32 %v148, %v157
        %v159 = vadd.f32 %v154, %v158
        %s160 = sadd.s32 %s151, 2
        %s161 = sld [smem:[#allocation2 + %s160]]
        %v162 = vstv %s161
        %v163 = vmul.f32 %v149, %v162
        %v164 = vadd.f32 %v159, %v163
        %s165 = sadd.s32 %s151, 3
        %s166 = sld [smem:[#allocation2 + %s165]]
        %v167 = vstv %s166
        %v168 = vmul.f32 %v150, %v167
        %v169 = vadd.f32 %v164, %v168
        %170 = vst [vmem:[%s146] sm:$0x1] %v169
        %s171 = sadd.s32 %s151, 4
        %s172 = sld [smem:[#allocation2 + %s171]]
        %v173 = vstv %s172
        %v174 = vmul.f32 %v147, %v173
        %s175 = sadd.s32 %s151, 5
        %s176 = sld [smem:[#allocation2 + %s175]]
        %v177 = vstv %s176
        %v178 = vmul.f32 %v148, %v177
        %v179 = vadd.f32 %v174, %v178
        %s180 = sadd.s32 %s151, 6
        %s181 = sld [smem:[#allocation2 + %s180]]
        %v182 = vstv %s181
        %v183 = vmul.f32 %v149, %v182
        %v184 = vadd.f32 %v179, %v183
        %s185 = sadd.s32 %s151, 7
        %s186 = sld [smem:[#allocation2 + %s185]]
        %v187 = vstv %s186
        %v188 = vmul.f32 %v150, %v187
        %v189 = vadd.f32 %v184, %v188
        %190 = vst [vmem:[%s146 + $0x1] sm:$0x1] %v189
        %s191 = sadd.s32 %s151, 8
        %s192 = sld [smem:[#allocation2 + %s191]]
        %v193 = vstv %s192
        %v194 = vmul.f32 %v147, %v193
        %s195 = sadd.s32 %s151, 9
        %s196 = sld [smem:[#allocation2 + %s195]]
        %v197 = vstv %s196
        %v198 = vmul.f32 %v148, %v197
        %v199 = vadd.f32 %v194, %v198
        %s200 = sadd.s32 %s151, 10
        %s201 = sld [smem:[#allocation2 + %s200]]
        %v202 = vstv %s201
        %v203 = vmul.f32 %v149, %v202
        %v204 = vadd.f32 %v199, %v203
        %s205 = sadd.s32 %s151, 11
        %s206 = sld [smem:[#allocation2 + %s205]]
        %v207 = vstv %s206
        %v208 = vmul.f32 %v150, %v207
        %v209 = vadd.f32 %v204, %v208
        %210 = vst [vmem:[%s146 + $0x2] sm:$0x1] %v209
        %s211 = sadd.s32 %s151, 12
        %s212 = sld [smem:[#allocation2 + %s211]]
        %v213 = vstv %s212
        %v214 = vmul.f32 %v147, %v213
        %s215 = sadd.s32 %s151, 13
        %s216 = sld [smem:[#allocation2 + %s215]]
        %v217 = vstv %s216
        %v218 = vmul.f32 %v148, %v217
        %v219 = vadd.f32 %v214, %v218
        %s220 = sadd.s32 %s151, 14
        %s221 = sld [smem:[#allocation2 + %s220]]
        %v222 = vstv %s221
        %v223 = vmul.f32 %v149, %v222
        %v224 = vadd.f32 %v219, %v223
        %s225 = sadd.s32 %s151, 15
        %s226 = sld [smem:[#allocation2 + %s225]]
        %v227 = vstv %s226
        %v228 = vmul.f32 %v150, %v227
        %v229 = vadd.f32 %v224, %v228
        %230 = vst [vmem:[%s146 + $0x3] sm:$0x1] %v229
        %s231 = sand.u32 %s68, 1
        %s232 = scalar_lea.sflag [#allocation4], %s231
        %s233 = sand.u32 %s68, 1
        %s234 = smul.addr %s233, 4
        %s235 = scalar_lea.vmem [#allocation7], %s234
        // Predicated region
        $region37: #{tpu_custom_call.1} parent=27 // pred_check
          %p236 = pneg %p78
        $region38: #{tpu_custom_call.1} parent=27 // pred_check_branch
          %238 = sbr.rel (%p236) target = $region40
        $region39: #{tpu_custom_call.1} parent=27 // pred_region
          %s240 = ssub.s32 64, 64
          %241 = vsyncadd %s232, %s240
          %s242 = smul.addr %s18, 64
          %s243 = scalar_lea.hbm %s2, %s242
          %s245 = sshll.u32 %s235, 4
          %s246 = int_to_ptr.vmem [resolvable:$true] %s245
          %248 = dma.vmem_to_hbm [thread:$0]  %s246, 64, %s243, %s232
        $region40: #{tpu_custom_call.1} parent=27 // pred_fallthru
          _
      $region28: #{tpu_custom_call.1} parent=5 // pred_fallthru
        _
      %p249 = scmp.le.s32.totalorder 2, %s13
      // Predicated region
      $region41: #{tpu_custom_call.1} parent=5 // pred_check
        %p250 = pneg %p249
      $region42: #{tpu_custom_call.1} parent=5 // pred_check_branch
        %252 = sbr.rel (%p250) target = $region44
      $region43: #{tpu_custom_call.1} parent=5 // pred_region
        %s253 = ssub.s32 %s13, 2
        // Predicated region
        $region45: #{tpu_custom_call.1} parent=43 // pred_check
          %p254 = pneg %p84
        $region46: #{tpu_custom_call.1} parent=43 // pred_check_branch
          %256 = sbr.rel (%p254) target = $region48
        $region47: #{tpu_custom_call.1} parent=43 // pred_region
          %s257 = sand.u32 %s69, 1
          %s258 = scalar_lea.sflag [#allocation4], %s257
          %s259 = sand.u32 %s69, 1
          %s260 = smul.addr %s259, 4
          %s261 = scalar_lea.vmem [#allocation7], %s260
          %262 = dma.done %s258, 64
        $region48: #{tpu_custom_call.1} parent=43 // pred_fallthru
          _
      $region44: #{tpu_custom_call.1} parent=5 // pred_fallthru
        _
    $region6: #{tpu_custom_call.1} parent=1 // loop_footer
      %s17 = sadd.s32 1, %s13
    $region7: #{tpu_custom_call.1} parent=1 // loop_footer_branch
      %12 = sbr.rel target = $region3
    $region8: #{tpu_custom_call.1} parent=1 // loop_exit
      _
    %263 = vsyncpa [#allocation3], 1
    %s264 = scalar_lea.sflag [#allocation3], 1
    %265 = vsyncpa %s264, 1
    %266 = vsyncpa [#allocation4], 1
    %s267 = scalar_lea.sflag [#allocation4], 1
    %268 = vsyncpa %s267, 1
    %269 = vsyncpa [#allocation5], 1
    %s270 = scalar_lea.sflag [#allocation5], 1
    %271 = vsyncpa %s270, 1

</llo_original>
